<compile_context>
chip_gen: v6e
topology: v6e:2x2x1
jax: 0.10.0
libtpu: 0.0.40
codegen_flags: <defaults>
</compile_context>

<pallas_src>
import math

import jax
import jax.numpy as jnp
from jax.experimental import pallas as pl
from jax.experimental.pallas import tpu as pltpu


# --------------------------------------------------------------------------- #
# Kernels
# --------------------------------------------------------------------------- #
def _add_softmax_reduce_sublanes_kernel(x_ref, y_ref, o_ref):
    """Lane-dense layout: block is (n, tm_lanes); softmax axis = sublanes."""
    s = x_ref[...].astype(jnp.float32) + y_ref[...].astype(jnp.float32)
    m = jnp.max(s, axis=0, keepdims=True)
    e = jnp.exp(s - m)
    denom = jnp.sum(e, axis=0, keepdims=True)
    # Denominator is lane-wide (1, tm_lanes): approx reciprocal lands on the
    # otherwise-idle EUP slot.
    o_ref[...] = (e * pl.reciprocal(denom, approx=True)).astype(o_ref.dtype)


def _add_softmax_reduce_lanes_kernel(x_ref, y_ref, o_ref):
    """Row-major layout: block is (tm_rows, n); softmax axis = lanes."""
    s = x_ref[...].astype(jnp.float32) + y_ref[...].astype(jnp.float32)
    m = jnp.max(s, axis=-1, keepdims=True)
    e = jnp.exp(s - m)
    denom = jnp.sum(e, axis=-1, keepdims=True)
    # denom is only a (tm, 1) column -> exact divide is essentially free; keep
    # full accuracy (approx reciprocal buys nothing here).
    o_ref[...] = (e / denom).astype(o_ref.dtype)


# --------------------------------------------------------------------------- #
# Tiling helpers
# --------------------------------------------------------------------------- #
def _tpu_vmem_capacity_bytes():
    try:
        return int(pltpu.get_tpu_info().vmem_capacity_bytes)
    except Exception:  # no TPU info available at trace time
        return 64 << 20  # conservative: v7x per-TensorCore physical VMEM


def _choose_tile(extent, bytes_per_unit, multiple, budget, max_tile):
    """Largest tile along `extent` (a multiple of `multiple`) whose live-tile
    bytes fit `budget`, capped so the grid has >= 2 steps when possible (so
    both v7x TensorCores get work under dimension_semantics='parallel')."""
    if extent <= multiple:
        return extent
    t = int(budget // max(bytes_per_unit, 1))
    t = min(t, max_tile, extent)
    t = (t // multiple) * multiple
    t = max(t, multiple)
    half = (extent // 2 // multiple) * multiple
    if half >= multiple:
        t = min(t, half)
    return t


# --------------------------------------------------------------------------- #
# Wrapper (forward-pass semantics of RedundantReshapePattern3)
# --------------------------------------------------------------------------- #
def redundant_reshape_pattern3(x, y):
    """out = softmax(x + y, axis=-1).

    torch.reshape(x, [1, *x.size()]) and the final reshape are redundant:
    softmax over dim=3 of the (1, B, M, N) tensor is softmax over the last
    dim of x.  The reshapes stay as metadata in the wrapper.
    """
    assert x.shape == y.shape and x.dtype == y.dtype
    orig_shape = x.shape
    n = int(orig_shape[-1])
    rows = int(math.prod(orig_shape[:-1])) if len(orig_shape) > 1 else 1

    # Tiny-input fast path (covers the module's (2, 3, 4) example): problem is
    # smaller than a single vreg tile, so a pallas_call is pure launch/step
    # overhead -- let XLA fuse add + softmax.
    if rows * n <= 8 * 128:
        s = x.astype(jnp.float32) + y.astype(jnp.float32)
        return jax.nn.softmax(s, axis=-1).astype(x.dtype)

    itemsize = jnp.dtype(x.dtype).itemsize
    # Live-tile bytes per row (or per lane in the lane-dense layout):
    #   2 inputs x 2 (double-buffer) + 1 output x 2, at input dtype, plus
    #   ~3 f32 intermediates (s, e, normalized result) materialized in VMEM.
    bytes_per_unit = n * (6 * itemsize + 3 * 4)

    vmem_cap = _tpu_vmem_capacity_bytes()
    budget = max(4 << 20, vmem_cap // 8)          # 16 MiB on v5e/v6e, 8 MiB on v7x
    vmem_limit = min(vmem_cap // 2, 64 << 20)

    compiler_params = pltpu.CompilerParams(
        dimension_semantics=("parallel",),        # rows are independent
        vmem_limit_bytes=vmem_limit,
    )
    vmem = pltpu.MemorySpace.VMEM

    # TODO(synk): for very large n where even one f32 row-tile of width n blows
    # the VMEM budget, switch to an online (flash-style) softmax over n-tiles
    # instead of shrinking the row tile to pathological sizes.

    if n < 128:
        # Lane-dense layout for small softmax widths: rows -> lanes, softmax
        # axis -> sublanes.  Avoids masked partial stores (4/128-lane vst.msk).
        xs = jnp.reshape(x, (rows, n)).T          # (n, rows)
        ys = jnp.reshape(y, (rows, n)).T
        tm = _choose_tile(rows, bytes_per_unit, 128, budget, 4096)
        grid = (pl.cdiv(rows, tm),)
        spec = pl.BlockSpec((n, tm), lambda i: (0, i), memory_space=vmem)
        out = pl.pallas_call(
            _add_softmax_reduce_sublanes_kernel,
            out_shape=jax.ShapeDtypeStruct((n, rows), x.dtype),
            grid=grid,
            in_specs=[spec, spec],
            out_specs=spec,
            compiler_params=compiler_params,
        )(xs, ys)
        return jnp.reshape(out.T, orig_shape)

    # Wide softmax axis: keep (rows, n) layout, reduce over lanes.
    x2d = jnp.reshape(x, (rows, n))
    y2d = jnp.reshape(y, (rows, n))
    tm = _choose_tile(rows, bytes_per_unit, 8, budget, 1024)
    grid = (pl.cdiv(rows, tm),)
    spec = pl.BlockSpec((tm, n), lambda i: (i, 0), memory_space=vmem)
    out = pl.pallas_call(
        _add_softmax_reduce_lanes_kernel,
        out_shape=jax.ShapeDtypeStruct((rows, n), x.dtype),
        grid=grid,
        in_specs=[spec, spec],
        out_specs=spec,
        compiler_params=compiler_params,
    )(x2d, y2d)
    return jnp.reshape(out, orig_shape)


# --------------------------------------------------------------------------- #
# Self-test
# --------------------------------------------------------------------------- #
if __name__ == "__main__":
    key = jax.random.PRNGKey(0)

    cases = [
        ((2, 3, 4), 1e-5),     # module's example shape -> tiny fast path
        ((8, 64, 16), 2e-3),   # small last dim -> lane-dense Pallas kernel
        ((2, 16, 256), 1e-5),  # wide last dim -> lane-reduce Pallas kernel
    ]
    for shape, tol in cases:
        key, kx, ky = jax.random.split(key, 3)
        x = jax.random.normal(kx, shape, dtype=jnp.float32)
        y = jax.random.normal(ky, shape, dtype=jnp.float32)

        out = jax.block_until_ready(redundant_reshape_pattern3(x, y))
        ref = jax.nn.softmax(x + y, axis=-1)

        assert out.shape == x.shape, shape
        assert out.dtype == x.dtype, shape
        assert jnp.allclose(out, ref, atol=tol, rtol=tol), shape

    print("KERNEL_OK")
</pallas_src>

<mosaic_0001>
module attributes {stable_mosaic.version = 11 : i64} {
  func.func @_add_softmax_reduce_sublanes_kernel(%arg0: i32, %arg1: memref<16x256xf32, #tpu.memory_space<vmem>>, %arg2: memref<16x256xf32, #tpu.memory_space<vmem>>, %arg3: memref<16x256xf32, #tpu.memory_space<vmem>>) attributes {dimension_semantics = [#tpu.dimension_semantics<parallel>], iteration_bounds = array<i64: 2>, scalar_prefetch = 0 : i64, scratch_operands = 0 : i64, tpu.core_type = #tpu.core_type<tc>, window_params = [{transform_indices = @transform_0, window_bounds = array<i64: 16, 256>}, {transform_indices = @transform_1, window_bounds = array<i64: 16, 256>}, {transform_indices = @transform_2, window_bounds = array<i64: 16, 256>}]} {
    %c0 = arith.constant 0 : index
    %c0_0 = arith.constant 0 : index
    %0 = vector.load %arg1[%c0, %c0_0] : memref<16x256xf32, #tpu.memory_space<vmem>>, vector<16x256xf32>
    %c0_1 = arith.constant 0 : index
    %c0_2 = arith.constant 0 : index
    %1 = vector.load %arg2[%c0_1, %c0_2] : memref<16x256xf32, #tpu.memory_space<vmem>>, vector<16x256xf32>
    %2 = arith.addf %0, %1 : vector<16x256xf32>
    %cst = arith.constant dense<0xFF800000> : vector<256xf32>
    %3 = vector.multi_reduction <maximumf>, %2, %cst [0] : vector<16x256xf32> to vector<256xf32>
    %4 = vector.shape_cast %3 : vector<256xf32> to vector<1x256xf32>
    %5 = vector.broadcast %4 : vector<1x256xf32> to vector<16x256xf32>
    %6 = arith.subf %2, %5 : vector<16x256xf32>
    %7 = math.exp %6 : vector<16x256xf32>
    %cst_3 = arith.constant dense<0.000000e+00> : vector<256xf32>
    %8 = vector.multi_reduction <add>, %7, %cst_3 [0] : vector<16x256xf32> to vector<256xf32>
    %9 = vector.shape_cast %8 : vector<256xf32> to vector<1x256xf32>
    %10 = tpu.reciprocal %9 {approx = true} : vector<1x256xf32> -> vector<1x256xf32>
    %11 = vector.broadcast %10 : vector<1x256xf32> to vector<16x256xf32>
    %12 = arith.mulf %7, %11 : vector<16x256xf32>
    %c0_4 = arith.constant 0 : index
    %c0_5 = arith.constant 0 : index
    %13 = vector.load %arg3[%c0_4, %c0_5] : memref<16x256xf32, #tpu.memory_space<vmem>>, vector<16x256xf32>
    tpu.vector_store %arg3[%c0_4, %c0_5], %12 {strides = array<i32>} : memref<16x256xf32, #tpu.memory_space<vmem>>, vector<16x256xf32>,
    return
  }
  func.func @transform_0(%arg0: i32) -> (i32, i32) {
    %c0_i32 = arith.constant 0 : i32
    %c0_i32_0 = arith.constant 0 : i32
    return %c0_i32, %arg0 : i32, i32
  }
  func.func @transform_1(%arg0: i32) -> (i32, i32) {
    %c0_i32 = arith.constant 0 : i32
    %c0_i32_0 = arith.constant 0 : i32
    return %c0_i32, %arg0 : i32, i32
  }
  func.func @transform_2(%arg0: i32) -> (i32, i32) {
    %c0_i32 = arith.constant 0 : i32
    %c0_i32_0 = arith.constant 0 : i32
    return %c0_i32, %arg0 : i32, i32
  }
}

</mosaic_0001>

<llo_original>
// kernel: tpu_custom_call.1
$region0: #{tpu_custom_call.1}
  #allocation0 [shape = 'u32[]', space=smem, size = 0x4, offset = 0x4, fixed_abs, tag = 'smem constant byte address 0x4 - core index']
  #allocation1 [shape = 'u32[144,128]{1,0:T(1,128)}', space=vmem, size = 0x12000, scoped, tag = 'internal scratch']
  %s0 = inlined_call_operand.hbm [shape: f32[16,512], index: 0, kind: input, shape index: {}]
  %s1 = inlined_call_operand.hbm [shape: f32[16,512], index: 1, kind: input, shape index: {}]
  %s2 = inlined_call_operand.hbm [shape: f32[16,512], index: 2, kind: output, shape index: {}]
  %s3 = sld [smem:[#allocation0]]
  $region49: #{tpu_custom_call.1} parent=0
    _
  %s5 = ssub.s32 1, %s3
  %s6 = scalar_select 0, %s5, %s3
  $region1: #{tpu_custom_call.1} parent=0
    #allocation2 [shape = 'u8[32768]{0}', space=vmem, size = 0x8000, scoped, tag = 'input window, operand 0']
    #allocation3 [shape = 's32[2]{0}', space=sflag, size = 0x8, scoped, tag = 'scoped memory for tpu_custom_call.1']
    #allocation4 [shape = 's32[2]{0}', space=sflag, size = 0x8, scoped, tag = 'scoped memory for tpu_custom_call.1']
    #allocation5 [shape = 'u8[32768]{0}', space=vmem, size = 0x8000, scoped, tag = 'input window, operand 1']
    #allocation6 [shape = 's32[2]{0}', space=sflag, size = 0x8, scoped, tag = 'scoped memory for tpu_custom_call.1']
    #allocation7 [shape = 'u8[32768]{0}', space=vmem, size = 0x8000, scoped, tag = 'output window, operand 0']
    %7 = vsyncpa [#allocation3], 0
    %s8 = scalar_lea.sflag [#allocation3], 1
    %9 = vsyncpa %s8, 0
    %10 = vsyncpa [#allocation6], 0
    %s11 = scalar_lea.sflag [#allocation6], 1
    %12 = vsyncpa %s11, 0
    %13 = vsyncpa [#allocation4], 0
    %s14 = scalar_lea.sflag [#allocation4], 1
    %15 = vsyncpa %s14, 0
    loop: start=0, step=1, limit=4
    $region2: #{tpu_custom_call.1} parent=1 // loop_pre_header
      _
    $region3: #{tpu_custom_call.1} parent=1 // loop_header
      %s17 = sphi 0, %s21
      %p18 = scmp.ge.s32.totalorder %s17, 4
      %s27 = sphi 0, %s29
      %s30 = sphi 0, %s27
      %s31 = sphi 0, %s30
      %s47 = sphi 0, %s31
      %s53 = sphi 0, %s55
      %s56 = sphi 0, %s53
      %s57 = sphi 0, %s56
      %s73 = sphi 0, %s57
      %s79 = sphi 0, %s81
      %s82 = sphi 0, %s79
      %s83 = sphi 0, %s82
      %s99 = sphi 0, %s83
    $region4: #{tpu_custom_call.1} parent=1 // loop_header_branch
      %20 = sbr.rel (%p18) target = $region8
    $region5: #{tpu_custom_call.1} parent=1 // loop_body
      %s22 = ssub.s32 %s17, 1
      %s23 = ssub.s32 %s17, 2
      %s24 = sadd.s32 %s17, 1
      %s25 = ssub.s32 %s17, %s24
      %p26 = scmp.eq.s32.totalorder %s25, 0
      %s28 = sadd.s32 %s27, 1
      %s29 = scalar_select %p26, %s27, %s28
      %p32 = pneg %p26
      %p33 = scmp.eq.s32.totalorder %s17, 1
      %p34 = por %p32, %p33
      %p35 = scmp.ne.s32.totalorder %s27, %s30
      %p36 = scmp.eq.s32.totalorder %s17, 0
      %p37 = por %p35, %p36
      %p38 = scmp.ne.s32.totalorder %s27, %s30
      %p39 = scmp.eq.s32.totalorder %s22, 1
      %p40 = por %p38, %p39
      %p41 = scmp.ne.s32.totalorder %s30, %s31
      %p42 = scmp.eq.s32.totalorder %s22, 0
      %p43 = por %p41, %p42
      %p44 = scmp.ne.s32.totalorder %s30, %s31
      %p45 = scmp.eq.s32.totalorder %s23, 1
      %p46 = por %p44, %p45
      %p48 = scmp.ne.s32.totalorder %s31, %s47
      %p49 = scmp.eq.s32.totalorder %s23, 0
      %p50 = por %p48, %p49
      %s51 = ssub.s32 %s17, %s24
      %p52 = scmp.eq.s32.totalorder %s51, 0
      %s54 = sadd.s32 %s53, 1
      %s55 = scalar_select %p52, %s53, %s54
      %p58 = pneg %p52
      %p59 = scmp.eq.s32.totalorder %s17, 1
      %p60 = por %p58, %p59
      %p61 = scmp.ne.s32.totalorder %s53, %s56
      %p62 = scmp.eq.s32.totalorder %s17, 0
      %p63 = por %p61, %p62
      %p64 = scmp.ne.s32.totalorder %s53, %s56
      %p65 = scmp.eq.s32.totalorder %s22, 1
      %p66 = por %p64, %p65
      %p67 = scmp.ne.s32.totalorder %s56, %s57
      %p68 = scmp.eq.s32.totalorder %s22, 0
      %p69 = por %p67, %p68
      %p70 = scmp.ne.s32.totalorder %s56, %s57
      %p71 = scmp.eq.s32.totalorder %s23, 1
      %p72 = por %p70, %p71
      %p74 = scmp.ne.s32.totalorder %s57, %s73
      %p75 = scmp.eq.s32.totalorder %s23, 0
      %p76 = por %p74, %p75
      %s77 = ssub.s32 %s17, %s24
      %p78 = scmp.eq.s32.totalorder %s77, 0
      %s80 = sadd.s32 %s79, 1
      %s81 = scalar_select %p78, %s79, %s80
      %p84 = pneg %p78
      %p85 = scmp.eq.s32.totalorder %s17, 1
      %p86 = por %p84, %p85
      %p87 = scmp.ne.s32.totalorder %s79, %s82
      %p88 = scmp.eq.s32.totalorder %s17, 0
      %p89 = por %p87, %p88
      %p90 = scmp.ne.s32.totalorder %s79, %s82
      %p91 = scmp.eq.s32.totalorder %s22, 1
      %p92 = por %p90, %p91
      %p93 = scmp.ne.s32.totalorder %s82, %s83
      %p94 = scmp.eq.s32.totalorder %s22, 0
      %p95 = por %p93, %p94
      %p96 = scmp.ne.s32.totalorder %s82, %s83
      %p97 = scmp.eq.s32.totalorder %s23, 1
      %p98 = por %p96, %p97
      %p100 = scmp.ne.s32.totalorder %s83, %s99
      %p101 = scmp.eq.s32.totalorder %s23, 0
      %p102 = por %p100, %p101
      %p103 = scmp.le.s32.totalorder 1, %s17
      %p104 = scmp.lt.s32.totalorder %s17, 3
      %p105 = pnand %p103, %p104
      %p106 = pneg %p105
      // Predicated region
      $region9: #{tpu_custom_call.1} parent=5 // pred_check
        _
      $region10: #{tpu_custom_call.1} parent=5 // pred_check_branch
        %108 = sbr.rel (%p105) target = $region12
      $region11: #{tpu_custom_call.1} parent=5 // pred_region
        %s109 = ssub.s32 %s17, 1
      $region12: #{tpu_custom_call.1} parent=5 // pred_fallthru
        _
      %p110 = scmp.lt.s32.totalorder %s17, 2
      // Predicated region
      $region13: #{tpu_custom_call.1} parent=5 // pred_check
        %p111 = pneg %p110
      $region14: #{tpu_custom_call.1} parent=5 // pred_check_branch
        %113 = sbr.rel (%p111) target = $region16
      $region15: #{tpu_custom_call.1} parent=5 // pred_region
        // Predicated region
        $region17: #{tpu_custom_call.1} parent=15 // pred_check
          %p114 = pneg %p37
        $region18: #{tpu_custom_call.1} parent=15 // pred_check_branch
          %116 = sbr.rel (%p114) target = $region20
        $region19: #{tpu_custom_call.1} parent=15 // pred_region
          %s117 = sand.u32 %s27, 1
          %s118 = scalar_lea.sflag [#allocation3], %s117
          %s119 = sand.u32 %s27, 1
          %s120 = smul.addr %s119, 32
          %s121 = scalar_lea.vmem [#allocation2], %s120
          %s122 = smul.u32 2, %s17
          %s124 = ssub.s32 512, 512
          %125 = vsyncadd %s118, %s124
          %s126 = smul.addr %s122, 128
          %s127 = scalar_lea.hbm %s0, %s126
          %s128 = sshll.u32 %s121, 4
          %s129 = int_to_ptr.vmem [resolvable:$true] %s128
          %134 = dma.hbm_to_vmem [thread:$0]  %s127, 512, %s129, %s118, 512, 256, 16
        $region20: #{tpu_custom_call.1} parent=15 // pred_fallthru
          _
        // Predicated region
        $region21: #{tpu_custom_call.1} parent=15 // pred_check
          %p135 = pneg %p63
        $region22: #{tpu_custom_call.1} parent=15 // pred_check_branch
          %137 = sbr.rel (%p135) target = $region24
        $region23: #{tpu_custom_call.1} parent=15 // pred_region
          %s138 = sand.u32 %s53, 1
          %s139 = scalar_lea.sflag [#allocation6], %s138
          %s140 = sand.u32 %s53, 1
          %s141 = smul.addr %s140, 32
          %s142 = scalar_lea.vmem [#allocation5], %s141
          %s143 = smul.u32 2, %s17
          %s145 = ssub.s32 512, 512
          %146 = vsyncadd %s139, %s145
          %s147 = smul.addr %s143, 128
          %s148 = scalar_lea.hbm %s1, %s147
          %s149 = sshll.u32 %s142, 4
          %s150 = int_to_ptr.vmem [resolvable:$true] %s149
          %155 = dma.hbm_to_vmem [thread:$0]  %s148, 512, %s150, %s139, 512, 256, 16
        $region24: #{tpu_custom_call.1} parent=15 // pred_fallthru
          _
      $region16: #{tpu_custom_call.1} parent=5 // pred_fallthru
        _
      %p156 = scmp.le.s32.totalorder 1, %s17
      %p157 = scmp.lt.s32.totalorder %s17, 3
      %p158 = pnand %p156, %p157
      %p159 = pneg %p158
      // Predicated region
      $region25: #{tpu_custom_call.1} parent=5 // pred_check
        _
      $region26: #{tpu_custom_call.1} parent=5 // pred_check_branch
        %161 = sbr.rel (%p158) target = $region28
      $region27: #{tpu_custom_call.1} parent=5 // pred_region
        %s162 = ssub.s32 %s17, 1
        %s163 = sand.u32 %s30, 1
        %s164 = scalar_lea.sflag [#allocation3], %s163
        %s165 = sand.u32 %s30, 1
        %s166 = smul.addr %s165, 32
        %s167 = scalar_lea.vmem [#allocation2], %s166
        // Predicated region
        $region29: #{tpu_custom_call.1} parent=27 // pred_check
          %p168 = pneg %p43
        $region30: #{tpu_custom_call.1} parent=27 // pred_check_branch
          %170 = sbr.rel (%p168) target = $region32
        $region31: #{tpu_custom_call.1} parent=27 // pred_region
          %171 = dma.done %s164, 512
        $region32: #{tpu_custom_call.1} parent=27 // pred_fallthru
          _
        %s172 = sand.u32 %s56, 1
        %s173 = scalar_lea.sflag [#allocation6], %s172
        %s174 = sand.u32 %s56, 1
        %s175 = smul.addr %s174, 32
        %s176 = scalar_lea.vmem [#allocation5], %s175
        // Predicated region
        $region33: #{tpu_custom_call.1} parent=27 // pred_check
          %p177 = pneg %p69
        $region34: #{tpu_custom_call.1} parent=27 // pred_check_branch
          %179 = sbr.rel (%p177) target = $region36
        $region35: #{tpu_custom_call.1} parent=27 // pred_region
          %180 = dma.done %s173, 512
        $region36: #{tpu_custom_call.1} parent=27 // pred_fallthru
          _
        %s181 = sand.u32 %s30, 1
        %s182 = scalar_lea.sflag [#allocation3], %s181
        %s183 = sand.u32 %s30, 1
        %s184 = smul.addr %s183, 32
        %s185 = scalar_lea.vmem [#allocation2], %s184
        %p186 = pneg %p43
        %p187 = pneg %p40
        %s188 = sand.u32 %s56, 1
        %s189 = scalar_lea.sflag [#allocation6], %s188
        %s190 = sand.u32 %s56, 1
        %s191 = smul.addr %s190, 32
        %s192 = scalar_lea.vmem [#allocation5], %s191
        %p193 = pneg %p69
        %p194 = pneg %p66
        %p195 = pneg %p95
        %p196 = pneg %p92
        %s197 = sand.u32 %s82, 1
        %s198 = scalar_lea.sflag [#allocation4], %s197
        %s199 = sand.u32 %s82, 1
        %s200 = smul.addr %s199, 32
        %s201 = scalar_lea.vmem [#allocation7], %s200
        %s202 = smul.u32 2, %s22
        %s203 = smul.u32 2, %s22
        %s204 = smul.u32 2, %s22
        %v205 = vld [vmem:[%s167] sm:$0xff]
        %v206 = vld [vmem:[%s167 + $0x8] sm:$0xff]
        %v207 = vld [vmem:[%s167 + $0x10] sm:$0xff]
        %v208 = vld [vmem:[%s167 + $0x18] sm:$0xff]
        %v209 = vld [vmem:[%s176] sm:$0xff]
        %v210 = vld [vmem:[%s176 + $0x8] sm:$0xff]
        %v211 = vld [vmem:[%s176 + $0x10] sm:$0xff]
        %v212 = vld [vmem:[%s176 + $0x18] sm:$0xff]
        %v213 = vadd.f32 %v205, %v209
        %v214 = vadd.f32 %v206, %v210
        %v215 = vadd.f32 %v207, %v211
        %v216 = vadd.f32 %v208, %v212
        %v217 = vmax.f32 %v213, %v215
        %v218 = vrot.slane %v217, 4
        %v219 = vmax.f32 %v217, %v218
        %v220 = vrot.slane %v219, 2
        %v221 = vmax.f32 %v219, %v220
        %v222 = vrot.slane %v221, 1
        %v223 = vmax.f32 %v221, %v222
        %v224 = vmax.f32 %v214, %v216
        %v225 = vrot.slane %v224, 4
        %v226 = vmax.f32 %v224, %v225
        %v227 = vrot.slane %v226, 2
        %v228 = vmax.f32 %v226, %v227
        %v229 = vrot.slane %v228, 1
        %v230 = vmax.f32 %v228, %v229
        %v231 = vsub.f32 %v213, %v223
        %v232 = vsub.f32 %v214, %v230
        %v233 = vsub.f32 %v215, %v223
        %v234 = vsub.f32 %v216, %v230
        %v235 = vmul.f32 %v231, 1.442695
        %v236 = vpow.pop %v235
        %v237 = vmul.f32 %v232, 1.442695
        %v238 = vpow.pop %v237
        %v239 = vmul.f32 %v233, 1.442695
        %v240 = vpow.pop %v239
        %v241 = vmul.f32 %v234, 1.442695
        %v242 = vpow.pop %v241
        %v243 = vadd.f32 %v236, %v240
        %v244 = vrot.slane %v243, 4
        %v245 = vadd.f32 %v243, %v244
        %v246 = vrot.slane %v245, 2
        %v247 = vadd.f32 %v245, %v246
        %v248 = vrot.slane %v247, 1
        %v249 = vadd.f32 %v247, %v248
        %v250 = vadd.f32 %v238, %v242
        %v251 = vrot.slane %v250, 4
        %v252 = vadd.f32 %v250, %v251
        %v253 = vrot.slane %v252, 2
        %v254 = vadd.f32 %v252, %v253
        %v255 = vrot.slane %v254, 1
        %v256 = vadd.f32 %v254, %v255
        %v257 = vrcp.pop %v249
        %v258 = vrcp.pop %v256
        %v259 = vmul.f32 %v236, %v257
        %v260 = vmul.f32 %v238, %v258
        %v261 = vmul.f32 %v240, %v257
        %v262 = vmul.f32 %v242, %v258
        %263 = vst [vmem:[%s201] sm:$0xff] %v259
        %264 = vst [vmem:[%s201 + $0x8] sm:$0xff] %v260
        %265 = vst [vmem:[%s201 + $0x10] sm:$0xff] %v261
        %266 = vst [vmem:[%s201 + $0x18] sm:$0xff] %v262
        %s267 = sand.u32 %s82, 1
        %s268 = scalar_lea.sflag [#allocation4], %s267
        %s269 = sand.u32 %s82, 1
        %s270 = smul.addr %s269, 32
        %s271 = scalar_lea.vmem [#allocation7], %s270
        // Predicated region
        $region37: #{tpu_custom_call.1} parent=27 // pred_check
          %p272 = pneg %p92
        $region38: #{tpu_custom_call.1} parent=27 // pred_check_branch
          %274 = sbr.rel (%p272) target = $region40
        $region39: #{tpu_custom_call.1} parent=27 // pred_region
          %s275 = smul.u32 2, %s22
          %s277 = ssub.s32 512, 512
          %278 = vsyncadd %s268, %s277
          %s279 = smul.addr %s275, 128
          %s280 = scalar_lea.hbm %s2, %s279
          %s281 = sshll.u32 %s271, 4
          %s282 = int_to_ptr.vmem [resolvable:$true] %s281
          %287 = dma.vmem_to_hbm [thread:$0]  %s282, 512, %s280, %s268, 256, 512, 16
        $region40: #{tpu_custom_call.1} parent=27 // pred_fallthru
          _
      $region28: #{tpu_custom_call.1} parent=5 // pred_fallthru
        _
      %p288 = scmp.le.s32.totalorder 2, %s17
      // Predicated region
      $region41: #{tpu_custom_call.1} parent=5 // pred_check
        %p289 = pneg %p288
      $region42: #{tpu_custom_call.1} parent=5 // pred_check_branch
        %291 = sbr.rel (%p289) target = $region44
      $region43: #{tpu_custom_call.1} parent=5 // pred_region
        %s292 = ssub.s32 %s17, 2
        // Predicated region
        $region45: #{tpu_custom_call.1} parent=43 // pred_check
          %p293 = pneg %p98
        $region46: #{tpu_custom_call.1} parent=43 // pred_check_branch
          %295 = sbr.rel (%p293) target = $region48
        $region47: #{tpu_custom_call.1} parent=43 // pred_region
          %s296 = sand.u32 %s83, 1
          %s297 = scalar_lea.sflag [#allocation4], %s296
          %s298 = sand.u32 %s83, 1
          %s299 = smul.addr %s298, 32
          %s300 = scalar_lea.vmem [#allocation7], %s299
          %301 = dma.done %s297, 512
        $region48: #{tpu_custom_call.1} parent=43 // pred_fallthru
          _
      $region44: #{tpu_custom_call.1} parent=5 // pred_fallthru
        _
    $region6: #{tpu_custom_call.1} parent=1 // loop_footer
      %s21 = sadd.s32 1, %s17
    $region7: #{tpu_custom_call.1} parent=1 // loop_footer_branch
      %16 = sbr.rel target = $region3
    $region8: #{tpu_custom_call.1} parent=1 // loop_exit
      _
    %302 = vsyncpa [#allocation3], 1
    %s303 = scalar_lea.sflag [#allocation3], 1
    %304 = vsyncpa %s303, 1
    %305 = vsyncpa [#allocation6], 1
    %s306 = scalar_lea.sflag [#allocation6], 1
    %307 = vsyncpa %s306, 1
    %308 = vsyncpa [#allocation4], 1
    %s309 = scalar_lea.sflag [#allocation4], 1
    %310 = vsyncpa %s309, 1

</llo_original>
